<compile_context>
chip_gen: v7x
topology: tpu7x:2x2x1
jax: 0.10.0
libtpu: 0.0.40
codegen_flags: <defaults>
</compile_context>

<pallas_src>
import jax
import jax.numpy as jnp
from jax import lax
from jax.experimental import pallas as pl
from jax.experimental.pallas import tpu as pltpu


# ----------------------------------------------------------------------------
# Kernel
# ----------------------------------------------------------------------------
def _layer_norm(y, gamma, beta, eps=1e-5):
    mu = jnp.mean(y, axis=-1, keepdims=True)
    yc = y - mu
    var = jnp.mean(yc * yc, axis=-1, keepdims=True)
    return yc * lax.rsqrt(var + eps) * gamma + beta


def _make_cross_attn_kernel(B, Lq, Lk, Cq, Ck, H, eps=1e-5):
    bf16 = jnp.bfloat16

    def kernel(q_ref, kv_ref, wq_ref, wkv_ref, vecs_ref, o_ref):
        # q_ref   : (B*Lq, Cq)      f32   query chunk, batch folded into rows
        # kv_ref  : (B*Lk, Ck)      f32   key/value chunk
        # wq_ref  : (Cq, H)         bf16  query projection weight
        # wkv_ref : (Ck, H+Cq)      bf16  fused [Wk | Wv]
        # vecs_ref: (3, 2H+Cq)      f32   rows = (bias, gamma, beta);
        #                                 cols [0:H]=q, [H:2H]=k, [2H:2H+Cq]=v
        # o_ref   : (B*Lq, Cq)      f32
        q_in = q_ref[...]
        kv_in = kv_ref[...]
        vecs = vecs_ref[...]

        bq, gq, betaq = vecs[0:1, 0:H], vecs[1:2, 0:H], vecs[2:3, 0:H]
        b_kv = vecs[0:1, H:2 * H + Cq]                       # fused k|v bias
        gk, betak = vecs[1:2, H:2 * H], vecs[2:3, H:2 * H]
        gv, betav = vecs[1:2, 2 * H:2 * H + Cq], vecs[2:3, 2 * H:2 * H + Cq]

        # ---- Projections: bf16 MXU operands, f32 accumulation, f32 LayerNorm.
        q = jnp.dot(q_in.astype(bf16), wq_ref[...],
                    preferred_element_type=jnp.float32) + bq          # (B*Lq, H)
        q = _layer_norm(q, gq, betaq, eps)

        y = jnp.dot(kv_in.astype(bf16), wkv_ref[...],
                    preferred_element_type=jnp.float32) + b_kv        # (B*Lk, H+Cq)
        k = _layer_norm(y[:, 0:H], gk, betak, eps)                    # (B*Lk, H)
        v = _layer_norm(y[:, H:H + Cq], gv, betav, eps)               # (B*Lk, Cq)

        # ---- Attention, per batch slice, plain 2-D dots (reference convention):
        #   S[b,i,j]   = sum_c k[b,i,c] * q[b,j,c]    (i = key pos, j = query pos)
        #   P          = softmax(S, over j)           (query axis!)
        #   out[b,j,c] = sum_i P[b,i,j] * v[b,i,c]
        # We build S already transposed (st[j,i] == S[i,j]); the softmax then
        # normalizes along axis 0 and P@V is a standard row-major matmul.
        for b in range(B):
            qb = q[b * Lq:(b + 1) * Lq, :].astype(bf16)   # (Lq, H)
            kb = k[b * Lk:(b + 1) * Lk, :].astype(bf16)   # (Lk, H)
            vb = v[b * Lk:(b + 1) * Lk, :].astype(bf16)   # (Lk, Cq)

            st = lax.dot_general(qb, kb, (((1,), (1,)), ((), ())),
                                 preferred_element_type=jnp.float32)  # (Lq, Lk)
            m = jnp.max(st, axis=0, keepdims=True)                    # over queries
            e = jnp.exp(st - m)
            p = e / jnp.sum(e, axis=0, keepdims=True)                 # exact, f32

            out_b = jnp.dot(p.astype(bf16), vb,
                            preferred_element_type=jnp.float32)       # (Lq, Cq)

            # Skip connection against the ORIGINAL (pre-projection) query chunk.
            o_ref[b * Lq:(b + 1) * Lq, :] = (
                out_b + q_in[b * Lq:(b + 1) * Lq, :]).astype(o_ref.dtype)

    return kernel


# ----------------------------------------------------------------------------
# Host-side parameter packing (14 -> 5 kernel operands).
# ----------------------------------------------------------------------------
def pack_head_params(params):
    wq, bq, gq, betaq = params["q"]      # wq (Cq, H); vectors (1, H)
    wk, bk, gk, betak = params["k"]      # wk (Ck, H)
    wv, bv, gv, betav = params["v"]      # wv (Ck, Cq)
    wq_bf = wq.astype(jnp.bfloat16)
    wkv_bf = jnp.concatenate([wk, wv], axis=1).astype(jnp.bfloat16)   # (Ck, H+Cq)
    vecs = jnp.concatenate([
        jnp.concatenate([bq, bk, bv], axis=1),
        jnp.concatenate([gq, gk, gv], axis=1),
        jnp.concatenate([betaq, betak, betav], axis=1),
    ], axis=0).astype(jnp.float32)                                     # (3, 2H+Cq)
    return wq_bf, wkv_bf, vecs


def cross_attention_pallas(q_seq, kv_seq, params):
    """One CrossAttentionLayer forward: single fused kernel over the whole batch."""
    B, Lq, Cq = q_seq.shape
    _, Lk, Ck = kv_seq.shape
    wq_bf, wkv_bf, vecs = pack_head_params(params)
    H = wq_bf.shape[1]
    assert wkv_bf.shape == (Ck, H + Cq)
    assert vecs.shape == (3, 2 * H + Cq)

    # Fold batch into matmul rows host-side (free, contiguous reshape).
    q2 = q_seq.reshape(B * Lq, Cq)
    kv2 = kv_seq.reshape(B * Lk, Ck)

    vmem = lambda: pl.BlockSpec(memory_space=pltpu.MemorySpace.VMEM)
    flops = 2 * (B * Lq * Cq * H + B * Lk * Ck * (H + Cq)
                 + B * Lq * Lk * H + B * Lq * Lk * Cq)
    bytes_accessed = (4 * (q2.size + kv2.size + vecs.size + B * Lq * Cq)
                      + 2 * (wq_bf.size + wkv_bf.size))

    out2 = pl.pallas_call(
        _make_cross_attn_kernel(B, Lq, Lk, Cq, Ck, H),
        out_shape=jax.ShapeDtypeStruct((B * Lq, Cq), jnp.float32),
        in_specs=[vmem() for _ in range(5)],
        out_specs=vmem(),
        compiler_params=pltpu.CompilerParams(vmem_limit_bytes=32 * 1024 * 1024),
        cost_estimate=pl.CostEstimate(flops=flops,
                                      transcendentals=B * Lq * Lk,
                                      bytes_accessed=bytes_accessed),
    )(q2, kv2, wq_bf, wkv_bf, vecs)
    return out2.reshape(B, Lq, Cq)


# ----------------------------------------------------------------------------
# MultiHeadCrossAttention wrapper (faithful to the reference: the ModuleList has
# a single layer, so zip() only processes the first chunk -> one pallas_call).
# ----------------------------------------------------------------------------
def multi_head_cross_attention(q_seq, kv_seq, head_params_list, head_input_size):
    n_q_chunks = q_seq.shape[-1] // head_input_size
    n_kv_chunks = kv_seq.shape[-1] // head_input_size
    q_chunks = [q_seq[..., i * head_input_size:(i + 1) * head_input_size]
                for i in range(n_q_chunks)]
    kv_chunks = [kv_seq[..., i * head_input_size:(i + 1) * head_input_size]
                 for i in range(n_kv_chunks)]
    out_chunks = []
    for head_params, qc, kvc in zip(head_params_list, q_chunks, kv_chunks):
        out_chunks.append(cross_attention_pallas(qc, kvc, head_params))
    return jnp.concatenate(out_chunks, axis=-1)


# ----------------------------------------------------------------------------
# Deterministic parameter init + pure-JAX references for verification.
# ----------------------------------------------------------------------------
def init_head_params(key, query_sequence_size, key_value_sequence_size, hidden_size):
    ks = jax.random.split(key, 12)
    def linear_ln(kw, kb, kg, kbeta, din, dout):
        w = 0.1 * jax.random.normal(kw, (din, dout), jnp.float32)
        b = 0.05 * jax.random.normal(kb, (1, dout), jnp.float32)
        g = 1.0 + 0.05 * jax.random.normal(kg, (1, dout), jnp.float32)
        beta = 0.02 * jax.random.normal(kbeta, (1, dout), jnp.float32)
        return (w, b, g, beta)
    return {
        "q": linear_ln(ks[0], ks[1], ks[2], ks[3], query_sequence_size, hidden_size),
        "k": linear_ln(ks[4], ks[5], ks[6], ks[7], key_value_sequence_size, hidden_size),
        "v": linear_ln(ks[8], ks[9], ks[10], ks[11], key_value_sequence_size, query_sequence_size),
    }


def _ref_proj(x, w, b, g, beta, eps=1e-5):
    y = x @ w + b
    mu = y.mean(-1, keepdims=True)
    var = ((y - mu) ** 2).mean(-1, keepdims=True)
    return (y - mu) / jnp.sqrt(var + eps) * g + beta


def ref_cross_attention_f32(q_seq, kv_seq, params):
    """Exact PyTorch-semantics reference in full f32."""
    q = _ref_proj(q_seq, *params["q"])
    k = _ref_proj(kv_seq, *params["k"])
    v = _ref_proj(kv_seq, *params["v"])
    scores = jnp.einsum("blc,bLc->blL", k, q)      # (B, Lk, Lq)
    p = jax.nn.softmax(scores, axis=-1)            # softmax over the QUERY axis
    out = jnp.einsum("bLl,bLc->blc", p, v)         # (B, Lq, Cq)
    return out + q_seq


def ref_cross_attention_matched(q_seq, kv_seq, params):
    """Same semantics, but with the kernel's precision path (bf16 matmul
    operands, f32 accumulation, f32 LN/softmax)."""
    bf = jnp.bfloat16

    def proj(x, w, b, g, beta, eps=1e-5):
        y = jnp.einsum("blc,cd->bld", x.astype(bf), w.astype(bf),
                       preferred_element_type=jnp.float32) + b
        mu = y.mean(-1, keepdims=True)
        yc = y - mu
        var = (yc * yc).mean(-1, keepdims=True)
        return yc * lax.rsqrt(var + eps) * g + beta

    q = proj(q_seq, *params["q"])
    k = proj(kv_seq, *params["k"])
    v = proj(kv_seq, *params["v"])
    scores = jnp.einsum("blc,bLc->blL", k.astype(bf), q.astype(bf),
                        preferred_element_type=jnp.float32)
    p = jax.nn.softmax(scores, axis=-1)
    out = jnp.einsum("bLl,bLc->blc", p.astype(bf), v.astype(bf),
                     preferred_element_type=jnp.float32)
    return out + q_seq


if __name__ == "__main__":
    # Module hyper-params (chosen so the chunking and Linear shapes inside the
    # reference are mutually consistent: head_input_size == query/kv feature size).
    num_heads = 2
    query_sequence_size = 16      # feature dim of the query sequence
    key_value_sequence_size = 16  # feature dim of the key/value sequence
    hidden_size = 32
    head_input_size = hidden_size // num_heads  # = 16

    B, Lq, Lk = 2, 8, 16

    key = jax.random.PRNGKey(0)
    k_q, k_kv, k_p = jax.random.split(key, 3)
    query_sequence = jax.random.normal(k_q, (B, Lq, query_sequence_size), jnp.float32)
    key_value_sequence = jax.random.normal(k_kv, (B, Lk, key_value_sequence_size), jnp.float32)

    # Single head in the ModuleList (as in the reference implementation).
    head_params_list = [init_head_params(
        k_p, query_sequence_size, key_value_sequence_size, head_input_size)]

    out = multi_head_cross_attention(
        query_sequence, key_value_sequence, head_params_list, head_input_size)
    out = jax.block_until_ready(out)
    assert out.shape == (B, Lq, head_input_size), out.shape

    q_chunk = query_sequence[..., :head_input_size]
    kv_chunk = key_value_sequence[..., :head_input_size]

    # Primary semantic check: precision-matched pure-JAX reference.
    ref_m = ref_cross_attention_matched(q_chunk, kv_chunk, head_params_list[0])
    err_m = float(jnp.max(jnp.abs(out - ref_m)))
    assert jnp.allclose(out, ref_m, atol=2e-3, rtol=2e-3), err_m

    # Sanity check against the full-f32 reference (differences come only from
    # bf16 matmul operands; softmax reciprocal is exact).
    ref_f = ref_cross_attention_f32(q_chunk, kv_chunk, head_params_list[0])
    err_f = float(jnp.max(jnp.abs(out - ref_f)))
    assert err_f < 0.5, err_f

    print("KERNEL_OK")
</pallas_src>

<mosaic_0001>
module attributes {stable_mosaic.version = 11 : i64} {
  func.func @kernel(%arg0: memref<16x16xf32, #tpu.memory_space<vmem>>, %arg1: memref<32x16xf32, #tpu.memory_space<vmem>>, %arg2: memref<16x16xbf16, #tpu.memory_space<vmem>>, %arg3: memref<16x32xbf16, #tpu.memory_space<vmem>>, %arg4: memref<3x48xf32, #tpu.memory_space<vmem>>, %arg5: memref<16x16xf32, #tpu.memory_space<vmem>>) attributes {dimension_semantics = [], scalar_prefetch = 0 : i64, scratch_operands = 0 : i64, tpu.core_type = #tpu.core_type<tc>} {
    %c0 = arith.constant 0 : index
    %c0_0 = arith.constant 0 : index
    %0 = vector.load %arg0[%c0, %c0_0] : memref<16x16xf32, #tpu.memory_space<vmem>>, vector<16x16xf32>
    %c0_1 = arith.constant 0 : index
    %c0_2 = arith.constant 0 : index
    %1 = vector.load %arg1[%c0_1, %c0_2] : memref<32x16xf32, #tpu.memory_space<vmem>>, vector<32x16xf32>
    %c0_3 = arith.constant 0 : index
    %c0_4 = arith.constant 0 : index
    %2 = vector.load %arg4[%c0_3, %c0_4] : memref<3x48xf32, #tpu.memory_space<vmem>>, vector<3x48xf32>
    %3 = vector.extract_strided_slice %2 {offsets = [0, 0], sizes = [1, 16], strides = [1, 1]} : vector<3x48xf32> to vector<1x16xf32>
    %4 = vector.extract_strided_slice %2 {offsets = [1, 0], sizes = [1, 16], strides = [1, 1]} : vector<3x48xf32> to vector<1x16xf32>
    %5 = vector.extract_strided_slice %2 {offsets = [2, 0], sizes = [1, 16], strides = [1, 1]} : vector<3x48xf32> to vector<1x16xf32>
    %6 = vector.extract_strided_slice %2 {offsets = [0, 16], sizes = [1, 32], strides = [1, 1]} : vector<3x48xf32> to vector<1x32xf32>
    %7 = vector.extract_strided_slice %2 {offsets = [1, 16], sizes = [1, 16], strides = [1, 1]} : vector<3x48xf32> to vector<1x16xf32>
    %8 = vector.extract_strided_slice %2 {offsets = [2, 16], sizes = [1, 16], strides = [1, 1]} : vector<3x48xf32> to vector<1x16xf32>
    %9 = vector.extract_strided_slice %2 {offsets = [1, 32], sizes = [1, 16], strides = [1, 1]} : vector<3x48xf32> to vector<1x16xf32>
    %10 = vector.extract_strided_slice %2 {offsets = [2, 32], sizes = [1, 16], strides = [1, 1]} : vector<3x48xf32> to vector<1x16xf32>
    %11 = arith.truncf %0 : vector<16x16xf32> to vector<16x16xbf16>
    %c0_5 = arith.constant 0 : index
    %c0_6 = arith.constant 0 : index
    %12 = vector.load %arg2[%c0_5, %c0_6] : memref<16x16xbf16, #tpu.memory_space<vmem>>, vector<16x16xbf16>
    %cst = arith.constant dense<0.000000e+00> : vector<16x16xf32>
    %13 = tpu.matmul %11, %12, %cst {dimension_numbers = #tpu.dot_dimension_numbers<[1], [0], [0], [1], [0, 0, 1, 1], [], []>} : vector<16x16xbf16>, vector<16x16xbf16>, vector<16x16xf32> -> vector<16x16xf32>
    %14 = vector.broadcast %3 : vector<1x16xf32> to vector<16x16xf32>
    %15 = arith.addf %13, %14 : vector<16x16xf32>
    %cst_7 = arith.constant dense<0.000000e+00> : vector<16xf32>
    %16 = vector.multi_reduction <add>, %15, %cst_7 [1] : vector<16x16xf32> to vector<16xf32>
    %17 = vector.shape_cast %16 : vector<16xf32> to vector<16x1xf32>
    %cst_8 = arith.constant 1.600000e+01 : f32
    %18 = vector.broadcast %cst_8 : f32 to vector<16x1xf32>
    %19 = arith.divf %17, %18 : vector<16x1xf32>
    %20 = vector.broadcast %19 : vector<16x1xf32> to vector<16x16xf32>
    %21 = arith.subf %15, %20 : vector<16x16xf32>
    %22 = arith.mulf %21, %21 : vector<16x16xf32>
    %cst_9 = arith.constant dense<0.000000e+00> : vector<16xf32>
    %23 = vector.multi_reduction <add>, %22, %cst_9 [1] : vector<16x16xf32> to vector<16xf32>
    %24 = vector.shape_cast %23 : vector<16xf32> to vector<16x1xf32>
    %cst_10 = arith.constant 1.600000e+01 : f32
    %25 = vector.broadcast %cst_10 : f32 to vector<16x1xf32>
    %26 = arith.divf %24, %25 : vector<16x1xf32>
    %cst_11 = arith.constant 9.99999974E-6 : f32
    %27 = vector.broadcast %cst_11 : f32 to vector<16x1xf32>
    %28 = arith.addf %26, %27 : vector<16x1xf32>
    %29 = math.rsqrt %28 : vector<16x1xf32>
    %30 = vector.broadcast %29 : vector<16x1xf32> to vector<16x16xf32>
    %31 = arith.mulf %21, %30 : vector<16x16xf32>
    %32 = vector.broadcast %4 : vector<1x16xf32> to vector<16x16xf32>
    %33 = arith.mulf %31, %32 : vector<16x16xf32>
    %34 = vector.broadcast %5 : vector<1x16xf32> to vector<16x16xf32>
    %35 = arith.addf %33, %34 : vector<16x16xf32>
    %36 = arith.truncf %1 : vector<32x16xf32> to vector<32x16xbf16>
    %c0_12 = arith.constant 0 : index
    %c0_13 = arith.constant 0 : index
    %37 = vector.load %arg3[%c0_12, %c0_13] : memref<16x32xbf16, #tpu.memory_space<vmem>>, vector<16x32xbf16>
    %cst_14 = arith.constant dense<0.000000e+00> : vector<32x32xf32>
    %38 = tpu.matmul %36, %37, %cst_14 {dimension_numbers = #tpu.dot_dimension_numbers<[1], [0], [0], [1], [0, 0, 1, 1], [], []>} : vector<32x16xbf16>, vector<16x32xbf16>, vector<32x32xf32> -> vector<32x32xf32>
    %39 = vector.broadcast %6 : vector<1x32xf32> to vector<32x32xf32>
    %40 = arith.addf %38, %39 : vector<32x32xf32>
    %41 = vector.extract_strided_slice %40 {offsets = [0, 0], sizes = [32, 16], strides = [1, 1]} : vector<32x32xf32> to vector<32x16xf32>
    %cst_15 = arith.constant dense<0.000000e+00> : vector<32xf32>
    %42 = vector.multi_reduction <add>, %41, %cst_15 [1] : vector<32x16xf32> to vector<32xf32>
    %43 = vector.shape_cast %42 : vector<32xf32> to vector<32x1xf32>
    %cst_16 = arith.constant 1.600000e+01 : f32
    %44 = vector.broadcast %cst_16 : f32 to vector<32x1xf32>
    %45 = arith.divf %43, %44 : vector<32x1xf32>
    %46 = vector.broadcast %45 : vector<32x1xf32> to vector<32x16xf32>
    %47 = arith.subf %41, %46 : vector<32x16xf32>
    %48 = arith.mulf %47, %47 : vector<32x16xf32>
    %cst_17 = arith.constant dense<0.000000e+00> : vector<32xf32>
    %49 = vector.multi_reduction <add>, %48, %cst_17 [1] : vector<32x16xf32> to vector<32xf32>
    %50 = vector.shape_cast %49 : vector<32xf32> to vector<32x1xf32>
    %cst_18 = arith.constant 1.600000e+01 : f32
    %51 = vector.broadcast %cst_18 : f32 to vector<32x1xf32>
    %52 = arith.divf %50, %51 : vector<32x1xf32>
    %cst_19 = arith.constant 9.99999974E-6 : f32
    %53 = vector.broadcast %cst_19 : f32 to vector<32x1xf32>
    %54 = arith.addf %52, %53 : vector<32x1xf32>
    %55 = math.rsqrt %54 : vector<32x1xf32>
    %56 = vector.broadcast %55 : vector<32x1xf32> to vector<32x16xf32>
    %57 = arith.mulf %47, %56 : vector<32x16xf32>
    %58 = vector.broadcast %7 : vector<1x16xf32> to vector<32x16xf32>
    %59 = arith.mulf %57, %58 : vector<32x16xf32>
    %60 = vector.broadcast %8 : vector<1x16xf32> to vector<32x16xf32>
    %61 = arith.addf %59, %60 : vector<32x16xf32>
    %62 = vector.extract_strided_slice %40 {offsets = [0, 16], sizes = [32, 16], strides = [1, 1]} : vector<32x32xf32> to vector<32x16xf32>
    %cst_20 = arith.constant dense<0.000000e+00> : vector<32xf32>
    %63 = vector.multi_reduction <add>, %62, %cst_20 [1] : vector<32x16xf32> to vector<32xf32>
    %64 = vector.shape_cast %63 : vector<32xf32> to vector<32x1xf32>
    %cst_21 = arith.constant 1.600000e+01 : f32
    %65 = vector.broadcast %cst_21 : f32 to vector<32x1xf32>
    %66 = arith.divf %64, %65 : vector<32x1xf32>
    %67 = vector.broadcast %66 : vector<32x1xf32> to vector<32x16xf32>
    %68 = arith.subf %62, %67 : vector<32x16xf32>
    %69 = arith.mulf %68, %68 : vector<32x16xf32>
    %cst_22 = arith.constant dense<0.000000e+00> : vector<32xf32>
    %70 = vector.multi_reduction <add>, %69, %cst_22 [1] : vector<32x16xf32> to vector<32xf32>
    %71 = vector.shape_cast %70 : vector<32xf32> to vector<32x1xf32>
    %cst_23 = arith.constant 1.600000e+01 : f32
    %72 = vector.broadcast %cst_23 : f32 to vector<32x1xf32>
    %73 = arith.divf %71, %72 : vector<32x1xf32>
    %cst_24 = arith.constant 9.99999974E-6 : f32
    %74 = vector.broadcast %cst_24 : f32 to vector<32x1xf32>
    %75 = arith.addf %73, %74 : vector<32x1xf32>
    %76 = math.rsqrt %75 : vector<32x1xf32>
    %77 = vector.broadcast %76 : vector<32x1xf32> to vector<32x16xf32>
    %78 = arith.mulf %68, %77 : vector<32x16xf32>
    %79 = vector.broadcast %9 : vector<1x16xf32> to vector<32x16xf32>
    %80 = arith.mulf %78, %79 : vector<32x16xf32>
    %81 = vector.broadcast %10 : vector<1x16xf32> to vector<32x16xf32>
    %82 = arith.addf %80, %81 : vector<32x16xf32>
    %83 = vector.extract_strided_slice %35 {offsets = [0, 0], sizes = [8, 16], strides = [1, 1]} : vector<16x16xf32> to vector<8x16xf32>
    %84 = arith.truncf %83 : vector<8x16xf32> to vector<8x16xbf16>
    %85 = vector.extract_strided_slice %61 {offsets = [0, 0], sizes = [16, 16], strides = [1, 1]} : vector<32x16xf32> to vector<16x16xf32>
    %86 = arith.truncf %85 : vector<16x16xf32> to vector<16x16xbf16>
    %87 = vector.extract_strided_slice %82 {offsets = [0, 0], sizes = [16, 16], strides = [1, 1]} : vector<32x16xf32> to vector<16x16xf32>
    %88 = arith.truncf %87 : vector<16x16xf32> to vector<16x16xbf16>
    %cst_25 = arith.constant dense<0.000000e+00> : vector<8x16xf32>
    %89 = tpu.matmul %84, %86, %cst_25 {dimension_numbers = #tpu.dot_dimension_numbers<[1], [1], [0], [0], [0, 0, 1, 0], [], []>} : vector<8x16xbf16>, vector<16x16xbf16>, vector<8x16xf32> -> vector<8x16xf32>
    %cst_26 = arith.constant dense<0xFF800000> : vector<16xf32>
    %90 = vector.multi_reduction <maximumf>, %89, %cst_26 [0] : vector<8x16xf32> to vector<16xf32>
    %91 = vector.shape_cast %90 : vector<16xf32> to vector<1x16xf32>
    %92 = vector.broadcast %91 : vector<1x16xf32> to vector<8x16xf32>
    %93 = arith.subf %89, %92 : vector<8x16xf32>
    %94 = math.exp %93 : vector<8x16xf32>
    %cst_27 = arith.constant dense<0.000000e+00> : vector<16xf32>
    %95 = vector.multi_reduction <add>, %94, %cst_27 [0] : vector<8x16xf32> to vector<16xf32>
    %96 = vector.shape_cast %95 : vector<16xf32> to vector<1x16xf32>
    %97 = vector.broadcast %96 : vector<1x16xf32> to vector<8x16xf32>
    %98 = arith.divf %94, %97 : vector<8x16xf32>
    %99 = arith.truncf %98 : vector<8x16xf32> to vector<8x16xbf16>
    %cst_28 = arith.constant dense<0.000000e+00> : vector<8x16xf32>
    %100 = tpu.matmul %99, %88, %cst_28 {dimension_numbers = #tpu.dot_dimension_numbers<[1], [0], [0], [1], [0, 0, 1, 1], [], []>} : vector<8x16xbf16>, vector<16x16xbf16>, vector<8x16xf32> -> vector<8x16xf32>
    %101 = vector.extract_strided_slice %0 {offsets = [0, 0], sizes = [8, 16], strides = [1, 1]} : vector<16x16xf32> to vector<8x16xf32>
    %102 = arith.addf %100, %101 : vector<8x16xf32>
    %c0_29 = arith.constant 0 : index
    %c0_30 = arith.constant 0 : index
    %103 = vector.load %arg5[%c0_29, %c0_30] : memref<16x16xf32, #tpu.memory_space<vmem>>, vector<8x16xf32>
    tpu.vector_store %arg5[%c0_29, %c0_30], %102 {strides = array<i32>} : memref<16x16xf32, #tpu.memory_space<vmem>>, vector<8x16xf32>,
    %104 = vector.extract_strided_slice %35 {offsets = [8, 0], sizes = [8, 16], strides = [1, 1]} : vector<16x16xf32> to vector<8x16xf32>
    %105 = arith.truncf %104 : vector<8x16xf32> to vector<8x16xbf16>
    %106 = vector.extract_strided_slice %61 {offsets = [16, 0], sizes = [16, 16], strides = [1, 1]} : vector<32x16xf32> to vector<16x16xf32>
    %107 = arith.truncf %106 : vector<16x16xf32> to vector<16x16xbf16>
    %108 = vector.extract_strided_slice %82 {offsets = [16, 0], sizes = [16, 16], strides = [1, 1]} : vector<32x16xf32> to vector<16x16xf32>
    %109 = arith.truncf %108 : vector<16x16xf32> to vector<16x16xbf16>
    %cst_31 = arith.constant dense<0.000000e+00> : vector<8x16xf32>
    %110 = tpu.matmul %105, %107, %cst_31 {dimension_numbers = #tpu.dot_dimension_numbers<[1], [1], [0], [0], [0, 0, 1, 0], [], []>} : vector<8x16xbf16>, vector<16x16xbf16>, vector<8x16xf32> -> vector<8x16xf32>
    %cst_32 = arith.constant dense<0xFF800000> : vector<16xf32>
    %111 = vector.multi_reduction <maximumf>, %110, %cst_32 [0] : vector<8x16xf32> to vector<16xf32>
    %112 = vector.shape_cast %111 : vector<16xf32> to vector<1x16xf32>
    %113 = vector.broadcast %112 : vector<1x16xf32> to vector<8x16xf32>
    %114 = arith.subf %110, %113 : vector<8x16xf32>
    %115 = math.exp %114 : vector<8x16xf32>
    %cst_33 = arith.constant dense<0.000000e+00> : vector<16xf32>
    %116 = vector.multi_reduction <add>, %115, %cst_33 [0] : vector<8x16xf32> to vector<16xf32>
    %117 = vector.shape_cast %116 : vector<16xf32> to vector<1x16xf32>
    %118 = vector.broadcast %117 : vector<1x16xf32> to vector<8x16xf32>
    %119 = arith.divf %115, %118 : vector<8x16xf32>
    %120 = arith.truncf %119 : vector<8x16xf32> to vector<8x16xbf16>
    %cst_34 = arith.constant dense<0.000000e+00> : vector<8x16xf32>
    %121 = tpu.matmul %120, %109, %cst_34 {dimension_numbers = #tpu.dot_dimension_numbers<[1], [0], [0], [1], [0, 0, 1, 1], [], []>} : vector<8x16xbf16>, vector<16x16xbf16>, vector<8x16xf32> -> vector<8x16xf32>
    %122 = vector.extract_strided_slice %0 {offsets = [8, 0], sizes = [8, 16], strides = [1, 1]} : vector<16x16xf32> to vector<8x16xf32>
    %123 = arith.addf %121, %122 : vector<8x16xf32>
    %c8 = arith.constant 8 : index
    %c0_35 = arith.constant 0 : index
    %124 = vector.load %arg5[%c8, %c0_35] : memref<16x16xf32, #tpu.memory_space<vmem>>, vector<8x16xf32>
    tpu.vector_store %arg5[%c8, %c0_35], %123 {strides = array<i32>} : memref<16x16xf32, #tpu.memory_space<vmem>>, vector<8x16xf32>,
    return
  }
}

</mosaic_0001>

<llo_original>
// kernel: tpu_custom_call.1
$region0: #{tpu_custom_call.1}
  #allocation0 [shape = 'u32[]', space=smem, size = 0x4, offset = 0x4, fixed_abs, tag = 'smem constant byte address 0x4 - core index']
  #allocation1 [shape = 'u32[144,128]{1,0:T(1,128)}', space=vmem, size = 0x12000, scoped, tag = 'internal scratch']
  %s0 = inlined_call_operand.vmem [shape: f32[16,16], index: 0, kind: input, shape index: {}]
  %s1 = inlined_call_operand.vmem [shape: f32[32,16], index: 1, kind: input, shape index: {}]
  %s2 = inlined_call_operand.vmem [shape: bf16[16,16], index: 2, kind: input, shape index: {}]
  %s3 = inlined_call_operand.vmem [shape: bf16[16,32], index: 3, kind: input, shape index: {}]
  %s4 = inlined_call_operand.vmem [shape: f32[3,48], index: 4, kind: input, shape index: {}]
  %s5 = inlined_call_operand.hbm [shape: f32[16,16], index: 5, kind: output, shape index: {}]
  %s6 = sld [smem:[#allocation0]]
  $region30: #{tpu_custom_call.1} parent=0
    _
  %s8 = ssub.s32 1, %s6
  %s9 = scalar_select 0, %s8, %s6
  $region1: #{tpu_custom_call.1} parent=0
    #allocation2 [shape = 'u8[8192]{0}', space=vmem, size = 0x2000, scoped, tag = 'output window, operand 0, single buffered']
    #allocation3 [shape = 's32[1]{0}', space=sflag, size = 0x4, scoped, tag = 'scoped memory for tpu_custom_call.1']
    %10 = vsyncpa [#allocation3], 0
    // Predicated region
    $region2: #{tpu_custom_call.1} parent=1 // pred_check
      _
    $region3: #{tpu_custom_call.1} parent=1 // pred_check_branch
      %12 = sbr.rel (0) target = $region5
    $region4: #{tpu_custom_call.1} parent=1 // pred_region
      _
    $region5: #{tpu_custom_call.1} parent=1 // pred_fallthru
      _
    // Predicated region
    $region6: #{tpu_custom_call.1} parent=1 // pred_check
      _
    $region7: #{tpu_custom_call.1} parent=1 // pred_check_branch
      %14 = sbr.rel (0) target = $region9
    $region8: #{tpu_custom_call.1} parent=1 // pred_region
      _
    $region9: #{tpu_custom_call.1} parent=1 // pred_fallthru
      _
    // Predicated region
    $region10: #{tpu_custom_call.1} parent=1 // pred_check
      _
    $region11: #{tpu_custom_call.1} parent=1 // pred_check_branch
      %16 = sbr.rel (0) target = $region13
    $region12: #{tpu_custom_call.1} parent=1 // pred_region
      _
    $region13: #{tpu_custom_call.1} parent=1 // pred_fallthru
      _
    // Predicated region
    $region14: #{tpu_custom_call.1} parent=1 // pred_check
      _
    $region15: #{tpu_custom_call.1} parent=1 // pred_check_branch
      %18 = sbr.rel (0) target = $region17
    $region16: #{tpu_custom_call.1} parent=1 // pred_region
      _
    $region17: #{tpu_custom_call.1} parent=1 // pred_fallthru
      _
    // Predicated region
    $region18: #{tpu_custom_call.1} parent=1 // pred_check
      _
    $region19: #{tpu_custom_call.1} parent=1 // pred_check_branch
      %20 = sbr.rel (0) target = $region21
    $region20: #{tpu_custom_call.1} parent=1 // pred_region
      _
    $region21: #{tpu_custom_call.1} parent=1 // pred_fallthru
      _
    %v22 = vld [vmem:[%s0] sm:$0xff]
    %v23 = vld [vmem:[%s0 + $0x8] sm:$0xff]
    %v24 = vld [vmem:[%s1] sm:$0xff]
    %v25 = vld [vmem:[%s1 + $0x8] sm:$0xff]
    %v26 = vld [vmem:[%s1 + $0x10] sm:$0xff]
    %v27 = vld [vmem:[%s1 + $0x18] sm:$0xff]
    %v28 = vld [vmem:[%s4] sm:$0x7]
    %v29 = vpack.c.bf16 %v23, %v22
    %v30 = vld [vmem:[%s2] sm:$0xf]
    %v31 = vld [vmem:[%s2 + $0x4] sm:$0xf]
    %v32 = vlaneseq
    %v33 = vshrl.u32 %v32, 7
    %v34 = vsub.s32 0, %v33
    %v35 = vrot.slane %v28, %v34
    %v38 = vunpack.c.l.b16 %v30
    %v39 = vunpack.c.l.b16 %v31
    %v40 = vpack.c.b16 %v39, %v38
    %vm42 = vcmask 130048
    %v44 = vsel %vm42, %v29, 0
    %46 = vmatprep.subr.bf16.mxu0 0
    %47 = vmatpush1.bf16.msra.mxu0 %v40
    %48 = vmatprep.subr.bf16.mxu0 0
    %49 = vmatpush1.bf16.msra.mxu0 0
    %50 = vmatprep.subr.bf16.mxu0 0
    %51 = vmatpush1.bf16.msra.mxu0 0
    %52 = vmatprep.subr.bf16.mxu0 0
    %53 = vmatpush1.bf16.msra.mxu0 0
    %54 = vmatprep.subr.bf16.mxu0 0
    %55 = vmatpush1.bf16.msra.mxu0 0
    %56 = vmatprep.subr.bf16.mxu0 0
    %57 = vmatpush1.bf16.msra.mxu0 0
    %58 = vmatprep.subr.bf16.mxu0 0
    %59 = vmatpush1.bf16.msra.mxu0 0
    %60 = vmatprep.subr.bf16.mxu0 0
    %61 = vmatpush1.bf16.msra.mxu0 0
    %62 = vmatprep.subr.bf16.mxu0 0
    %63 = vmatpush1.bf16.msra.mxu0 0
    %64 = vmatprep.subr.bf16.mxu0 0
    %65 = vmatpush1.bf16.msra.mxu0 0
    %66 = vmatprep.subr.bf16.mxu0 0
    %67 = vmatpush1.bf16.msra.mxu0 0
    %68 = vmatprep.subr.bf16.mxu0 0
    %69 = vmatpush1.bf16.msra.mxu0 0
    %70 = vmatprep.subr.bf16.mxu0 0
    %71 = vmatpush1.bf16.msra.mxu0 0
    %72 = vmatprep.subr.bf16.mxu0 0
    %73 = vmatpush1.bf16.msra.mxu0 0
    %74 = vmatprep.subr.bf16.mxu0 0
    %75 = vmatpush1.bf16.msra.mxu0 0
    %76 = vmatprep.subr.bf16.mxu0 0
    %77 = vmatpush1.bf16.msra.mxu0 0
    %78 = vmatprep.mubr.bf16.mxu0 0
    %79 = vmatmul.mubr.bf16.gmra.mrb[0].mxu0 %v44
    %v80 = vpop.f32.mrb[0].mxu0
    %v81 = vadd.f32 %v35, %v80
    %v82 = vpop.f32.mrb[0].mxu0
    %v83 = vpop.f32.mrb[0].mxu0
    %v84 = vadd.f32 %v35, %v83
    %v85 = vpop.f32.mrb[0].mxu0
    %86 = vdwg.mxu0
    %v87 = vsel %vm42, %v81, 0.0
    %88 = vadd.xlane.f32.xlu0 %v87
    %v89 = vpop.xlane.xlu0 %88
    %v90 = vsel %vm42, %v84, 0.0
    %91 = vadd.xlane.f32.xlu0 %v90
    %v92 = vpop.xlane.xlu0 %91
    %v93 = vrcp.pop 16.0
    %v94 = vmul.f32 %v89, %v93
    %v95 = vmul.f32 %v92, %v93
    %v96 = vsub.f32 %v81, %v94
    %v97 = vsub.f32 %v84, %v95
    %v98 = vmul.f32 %v96, %v96
    %v99 = vmul.f32 %v97, %v97
    %v100 = vsel %vm42, %v98, 0.0
    %101 = vadd.xlane.f32.xlu0 %v100
    %v102 = vpop.xlane.xlu0 %101
    %v103 = vsel %vm42, %v99, 0.0
    %104 = vadd.xlane.f32.xlu0 %v103
    %v105 = vpop.xlane.xlu0 %104
    %v106 = vmul.f32 %v102, %v93
    %v107 = vmul.f32 %v105, %v93
    %v108 = vadd.f32 %v106, 1e-05
    %v109 = vadd.f32 %v107, 1e-05
    %v110 = vrsqrt.pop %v108
    %v111 = vrsqrt.pop %v109
    %v112 = vmul.f32 %v96, %v110
    %v113 = vmul.f32 %v97, %v111
    %v114 = vlaneseq
    %v115 = vshrl.u32 %v114, 7
    %v116 = vsub.s32 1, %v115
    %v117 = vrot.slane %v28, %v116
    %v118 = vmul.f32 %v112, %v117
    %v119 = vmul.f32 %v113, %v117
    %v120 = vlaneseq
    %v121 = vshrl.u32 %v120, 7
    %v122 = vsub.s32 2, %v121
    %v123 = vrot.slane %v28, %v122
    %v124 = vadd.f32 %v118, %v123
    %v125 = vadd.f32 %v119, %v123
    %v126 = vpack.c.bf16 %v25, %v24
    %v127 = vpack.c.bf16 %v27, %v26
    %v128 = vld [vmem:[%s3] sm:$0xf]
    %v129 = vld [vmem:[%s3 + $0x4] sm:$0xf]
    %v132 = vunpack.c.l.b16 %v128
    %v133 = vunpack.c.l.b16 %v129
    %v134 = vpack.c.b16 %v133, %v132
    %137 = vrot.lane.b32.xlu0 %v35, 112
    %v138 = vpop.permute.xlu0 %137
    %v141 = vsel %vm42, %v126, 0
    %v144 = vsel %vm42, %v127, 0
    %146 = vmatprep.subr.bf16.mxu0 0
    %147 = vmatpush1.bf16.msra.mxu0 %v134
    %148 = vmatprep.subr.bf16.mxu0 0
    %149 = vmatpush1.bf16.msra.mxu0 0
    %150 = vmatprep.subr.bf16.mxu0 0
    %151 = vmatpush1.bf16.msra.mxu0 0
    %152 = vmatprep.subr.bf16.mxu0 0
    %153 = vmatpush1.bf16.msra.mxu0 0
    %154 = vmatprep.subr.bf16.mxu0 0
    %155 = vmatpush1.bf16.msra.mxu0 0
    %156 = vmatprep.subr.bf16.mxu0 0
    %157 = vmatpush1.bf16.msra.mxu0 0
    %158 = vmatprep.subr.bf16.mxu0 0
    %159 = vmatpush1.bf16.msra.mxu0 0
    %160 = vmatprep.subr.bf16.mxu0 0
    %161 = vmatpush1.bf16.msra.mxu0 0
    %162 = vmatprep.subr.bf16.mxu0 0
    %163 = vmatpush1.bf16.msra.mxu0 0
    %164 = vmatprep.subr.bf16.mxu0 0
    %165 = vmatpush1.bf16.msra.mxu0 0
    %166 = vmatprep.subr.bf16.mxu0 0
    %167 = vmatpush1.bf16.msra.mxu0 0
    %168 = vmatprep.subr.bf16.mxu0 0
    %169 = vmatpush1.bf16.msra.mxu0 0
    %170 = vmatprep.subr.bf16.mxu0 0
    %171 = vmatpush1.bf16.msra.mxu0 0
    %172 = vmatprep.subr.bf16.mxu0 0
    %173 = vmatpush1.bf16.msra.mxu0 0
    %174 = vmatprep.subr.bf16.mxu0 0
    %175 = vmatpush1.bf16.msra.mxu0 0
    %176 = vmatprep.subr.bf16.mxu0 0
    %177 = vmatpush1.bf16.msra.mxu0 0
    %178 = vmatprep.mubr.bf16.mxu0 0
    %179 = vmatmul.mubr.bf16.gmra.mrb[0].mxu0 %v141
    %v180 = vpop.f32.mrb[0].mxu0
    %v181 = vadd.f32 %v138, %v180
    %v182 = vpop.f32.mrb[0].mxu0
    %v183 = vpop.f32.mrb[0].mxu0
    %v184 = vadd.f32 %v138, %v183
    %v185 = vpop.f32.mrb[0].mxu0
    %186 = vmatprep.mubr.bf16.mxu0 0
    %187 = vmatmul.mubr.bf16.gmra.mrb[0].mxu0 %v144
    %v188 = vpop.f32.mrb[0].mxu0
    %v189 = vadd.f32 %v138, %v188
    %v190 = vpop.f32.mrb[0].mxu0
    %v191 = vpop.f32.mrb[0].mxu0
    %v192 = vadd.f32 %v138, %v191
    %v193 = vpop.f32.mrb[0].mxu0
    %194 = vdwg.mxu0
    %v195 = vsel %vm42, %v181, 0.0
    %196 = vadd.xlane.f32.xlu0 %v195
    %v197 = vpop.xlane.xlu0 %196
    %v198 = vsel %vm42, %v184, 0.0
    %199 = vadd.xlane.f32.xlu0 %v198
    %v200 = vpop.xlane.xlu0 %199
    %v201 = vsel %vm42, %v189, 0.0
    %202 = vadd.xlane.f32.xlu0 %v201
    %v203 = vpop.xlane.xlu0 %202
    %v204 = vsel %vm42, %v192, 0.0
    %205 = vadd.xlane.f32.xlu0 %v204
    %v206 = vpop.xlane.xlu0 %205
    %v207 = vmul.f32 %v197, %v93
    %v208 = vmul.f32 %v200, %v93
    %v209 = vmul.f32 %v203, %v93
    %v210 = vmul.f32 %v206, %v93
    %v211 = vsub.f32 %v181, %v207
    %v212 = vsub.f32 %v184, %v208
    %v213 = vsub.f32 %v189, %v209
    %v214 = vsub.f32 %v192, %v210
    %v215 = vmul.f32 %v211, %v211
    %v216 = vmul.f32 %v212, %v212
    %v217 = vmul.f32 %v213, %v213
    %v218 = vmul.f32 %v214, %v214
    %v219 = vsel %vm42, %v215, 0.0
    %220 = vadd.xlane.f32.xlu0 %v219
    %v221 = vpop.xlane.xlu0 %220
    %v222 = vsel %vm42, %v216, 0.0
    %223 = vadd.xlane.f32.xlu0 %v222
    %v224 = vpop.xlane.xlu0 %223
    %v225 = vsel %vm42, %v217, 0.0
    %226 = vadd.xlane.f32.xlu0 %v225
    %v227 = vpop.xlane.xlu0 %226
    %v228 = vsel %vm42, %v218, 0.0
    %229 = vadd.xlane.f32.xlu0 %v228
    %v230 = vpop.xlane.xlu0 %229
    %v231 = vmul.f32 %v221, %v93
    %v232 = vmul.f32 %v224, %v93
    %v233 = vmul.f32 %v227, %v93
    %v234 = vmul.f32 %v230, %v93
    %v235 = vadd.f32 %v231, 1e-05
    %v236 = vadd.f32 %v232, 1e-05
    %v237 = vadd.f32 %v233, 1e-05
    %v238 = vadd.f32 %v234, 1e-05
    %v239 = vrsqrt.pop %v235
    %v240 = vrsqrt.pop %v236
    %v241 = vrsqrt.pop %v237
    %v242 = vrsqrt.pop %v238
    %v243 = vmul.f32 %v211, %v239
    %v244 = vmul.f32 %v212, %v240
    %v245 = vmul.f32 %v213, %v241
    %v246 = vmul.f32 %v214, %v242
    %248 = vrot.lane.b32.xlu0 %v117, 112
    %v249 = vpop.permute.xlu0 %248
    %v251 = vmul.f32 %v243, %v249
    %v252 = vmul.f32 %v244, %v249
    %v253 = vmul.f32 %v245, %v249
    %v254 = vmul.f32 %v246, %v249
    %256 = vrot.lane.b32.xlu0 %v123, 112
    %v257 = vpop.permute.xlu0 %256
    %v259 = vadd.f32 %v251, %v257
    %v260 = vadd.f32 %v252, %v257
    %v261 = vadd.f32 %v253, %v257
    %v262 = vadd.f32 %v254, %v257
    %267 = vrot.lane.b32.xlu0 %v181, 112
    %v268 = vpop.permute.xlu0 %267
    %269 = vrot.lane.b32.xlu0 %v184, 112
    %v270 = vpop.permute.xlu0 %269
    %271 = vrot.lane.b32.xlu0 %v189, 112
    %v272 = vpop.permute.xlu0 %271
    %273 = vrot.lane.b32.xlu0 %v192, 112
    %v274 = vpop.permute.xlu0 %273
    %v279 = vsel %vm42, %v268, 0.0
    %280 = vadd.xlane.f32.xlu0 %v279
    %v281 = vpop.xlane.xlu0 %280
    %v282 = vsel %vm42, %v270, 0.0
    %283 = vadd.xlane.f32.xlu0 %v282
    %v284 = vpop.xlane.xlu0 %283
    %v285 = vsel %vm42, %v272, 0.0
    %286 = vadd.xlane.f32.xlu0 %v285
    %v287 = vpop.xlane.xlu0 %286
    %v288 = vsel %vm42, %v274, 0.0
    %289 = vadd.xlane.f32.xlu0 %v288
    %v290 = vpop.xlane.xlu0 %289
    %v291 = vmul.f32 %v281, %v93
    %v292 = vmul.f32 %v284, %v93
    %v293 = vmul.f32 %v287, %v93
    %v294 = vmul.f32 %v290, %v93
    %v295 = vsub.f32 %v181, %v291
    %v296 = vsub.f32 %v184, %v292
    %v297 = vsub.f32 %v189, %v293
    %v298 = vsub.f32 %v192, %v294
    %v299 = vmul.f32 %v295, %v295
    %v300 = vmul.f32 %v296, %v296
    %v301 = vmul.f32 %v297, %v297
    %v302 = vmul.f32 %v298, %v298
    %307 = vrot.lane.b32.xlu0 %v299, 112
    %v308 = vpop.permute.xlu0 %307
    %309 = vrot.lane.b32.xlu0 %v300, 112
    %v310 = vpop.permute.xlu0 %309
    %311 = vrot.lane.b32.xlu0 %v301, 112
    %v312 = vpop.permute.xlu0 %311
    %313 = vrot.lane.b32.xlu0 %v302, 112
    %v314 = vpop.permute.xlu0 %313
    %v319 = vsel %vm42, %v308, 0.0
    %320 = vadd.xlane.f32.xlu0 %v319
    %v321 = vpop.xlane.xlu0 %320
    %v322 = vsel %vm42, %v310, 0.0
    %323 = vadd.xlane.f32.xlu0 %v322
    %v324 = vpop.xlane.xlu0 %323
    %v325 = vsel %vm42, %v312, 0.0
    %326 = vadd.xlane.f32.xlu0 %v325
    %v327 = vpop.xlane.xlu0 %326
    %v328 = vsel %vm42, %v314, 0.0
    %329 = vadd.xlane.f32.xlu0 %v328
    %v330 = vpop.xlane.xlu0 %329
    %v331 = vmul.f32 %v321, %v93
    %v332 = vmul.f32 %v324, %v93
    %v333 = vmul.f32 %v327, %v93
    %v334 = vmul.f32 %v330, %v93
    %v335 = vadd.f32 %v331, 1e-05
    %v336 = vadd.f32 %v332, 1e-05
    %v337 = vadd.f32 %v333, 1e-05
    %v338 = vadd.f32 %v334, 1e-05
    %v339 = vrsqrt.pop %v335
    %v340 = vrsqrt.pop %v336
    %v341 = vrsqrt.pop %v337
    %v342 = vrsqrt.pop %v338
    %v343 = vmul.f32 %v295, %v339
    %v344 = vmul.f32 %v296, %v340
    %v345 = vmul.f32 %v297, %v341
    %v346 = vmul.f32 %v298, %v342
    %v347 = vmul.f32 %v343, %v249
    %v348 = vmul.f32 %v344, %v249
    %v349 = vmul.f32 %v345, %v249
    %v350 = vmul.f32 %v346, %v249
    %v351 = vadd.f32 %v347, %v257
    %v352 = vadd.f32 %v348, %v257
    %v353 = vadd.f32 %v349, %v257
    %v354 = vadd.f32 %v350, %v257
    %v355 = vpack.c.bf16 %v124, %v124
    %v356 = vpack.c.bf16 %v260, %v259
    %v357 = vpack.c.bf16 %v352, %v351
    %v359 = vsel %vm42, %v355, 0
    %v362 = vsel %vm42, %v356, 0
    %364 = vmatprep.subr.bf16.mxu0 0
    %365 = vmatpush1.bf16.xpose.msra.mxu0 %v362
    %366 = vmatprep.subr.bf16.mxu0 0
    %367 = vmatpush1.bf16.xpose.msra.mxu0 0
    %368 = vmatprep.subr.bf16.mxu0 0
    %369 = vmatpush1.bf16.xpose.msra.mxu0 0
    %370 = vmatprep.subr.bf16.mxu0 0
    %371 = vmatpush1.bf16.xpose.msra.mxu0 0
    %372 = vmatprep.subr.bf16.mxu0 0
    %373 = vmatpush1.bf16.xpose.msra.mxu0 0
    %374 = vmatprep.subr.bf16.mxu0 0
    %375 = vmatpush1.bf16.xpose.msra.mxu0 0
    %376 = vmatprep.subr.bf16.mxu0 0
    %377 = vmatpush1.bf16.xpose.msra.mxu0 0
    %378 = vmatprep.subr.bf16.mxu0 0
    %379 = vmatpush1.bf16.xpose.msra.mxu0 0
    %380 = vmatprep.subr.bf16.mxu0 0
    %381 = vmatpush1.bf16.xpose.msra.mxu0 0
    %382 = vmatprep.subr.bf16.mxu0 0
    %383 = vmatpush1.bf16.xpose.msra.mxu0 0
    %384 = vmatprep.subr.bf16.mxu0 0
    %385 = vmatpush1.bf16.xpose.msra.mxu0 0
    %386 = vmatprep.subr.bf16.mxu0 0
    %387 = vmatpush1.bf16.xpose.msra.mxu0 0
    %388 = vmatprep.subr.bf16.mxu0 0
    %389 = vmatpush1.bf16.xpose.msra.mxu0 0
    %390 = vmatprep.subr.bf16.mxu0 0
    %391 = vmatpush1.bf16.xpose.msra.mxu0 0
    %392 = vmatprep.subr.bf16.mxu0 0
    %393 = vmatpush1.bf16.xpose.msra.mxu0 0
    %394 = vmatprep.subr.bf16.mxu0 0
    %395 = vmatpush1.bf16.xpose.msra.mxu0 0
    %396 = vmatprep.mubr.bf16.mxu0 0
    %397 = vmatmul.mubr.bf16.gmra.mrb[0].mxu0 %v359
    %v398 = vpop.f32.mrb[0].mxu0
    %v399 = vadd.f32 0.0, %v398
    %v400 = vpop.f32.mrb[0].mxu0
    %v401 = vpop.f32.mrb[0].mxu0
    %v402 = vpop.f32.mrb[0].mxu0
    %403 = vdwg.mxu0
    %v404 = vsel %vm42, %v399, -inf
    %v405 = vrot.slane %v404, 4
    %v406 = vmax.f32 %v404, %v405
    %v407 = vrot.slane %v406, 2
    %v408 = vmax.f32 %v406, %v407
    %v409 = vrot.slane %v408, 1
    %v410 = vmax.f32 %v408, %v409
    %v411 = vsub.f32 %v399, %v410
    %v412 = vmul.f32 %v411, 1.442695
    %v413 = vpow.pop %v412
    %v414 = vsel %vm42, %v413, 0.0
    %v415 = vrot.slane %v414, 4
    %v416 = vadd.f32 %v414, %v415
    %v417 = vrot.slane %v416, 2
    %v418 = vadd.f32 %v416, %v417
    %v419 = vrot.slane %v418, 1
    %v420 = vadd.f32 %v418, %v419
    %v421 = vrcp.pop %v420
    %v422 = vmul.f32 %v413, %v421
    %v423 = vpack.c.bf16 %v422, %v422
    %425 = vrot.lane.b32.xlu0 %v357, 112
    %v426 = vpop.permute.xlu0 %425
    %v429 = vsel %vm42, %v423, 0
    %431 = vmatprep.subr.bf16.mxu0 0
    %432 = vmatpush1.bf16.msra.mxu0 %v426
    %433 = vmatprep.subr.bf16.mxu0 0
    %434 = vmatpush1.bf16.msra.mxu0 0
    %435 = vmatprep.subr.bf16.mxu0 0
    %436 = vmatpush1.bf16.msra.mxu0 0
    %437 = vmatprep.subr.bf16.mxu0 0
    %438 = vmatpush1.bf16.msra.mxu0 0
    %439 = vmatprep.subr.bf16.mxu0 0
    %440 = vmatpush1.bf16.msra.mxu0 0
    %441 = vmatprep.subr.bf16.mxu0 0
    %442 = vmatpush1.bf16.msra.mxu0 0
    %443 = vmatprep.subr.bf16.mxu0 0
    %444 = vmatpush1.bf16.msra.mxu0 0
    %445 = vmatprep.subr.bf16.mxu0 0
    %446 = vmatpush1.bf16.msra.mxu0 0
    %447 = vmatprep.subr.bf16.mxu0 0
    %448 = vmatpush1.bf16.msra.mxu0 0
    %449 = vmatprep.subr.bf16.mxu0 0
    %450 = vmatpush1.bf16.msra.mxu0 0
    %451 = vmatprep.subr.bf16.mxu0 0
    %452 = vmatpush1.bf16.msra.mxu0 0
    %453 = vmatprep.subr.bf16.mxu0 0
    %454 = vmatpush1.bf16.msra.mxu0 0
    %455 = vmatprep.subr.bf16.mxu0 0
    %456 = vmatpush1.bf16.msra.mxu0 0
    %457 = vmatprep.subr.bf16.mxu0 0
    %458 = vmatpush1.bf16.msra.mxu0 0
    %459 = vmatprep.subr.bf16.mxu0 0
    %460 = vmatpush1.bf16.msra.mxu0 0
    %461 = vmatprep.subr.bf16.mxu0 0
    %462 = vmatpush1.bf16.msra.mxu0 0
    %463 = vmatprep.mubr.bf16.mxu0 0
    %464 = vmatmul.mubr.bf16.gmra.mrb[0].mxu0 %v429
    %v465 = vpop.f32.mrb[0].mxu0
    %v466 = vadd.f32 %v22, %v465
    %v467 = vpop.f32.mrb[0].mxu0
    %v468 = vpop.f32.mrb[0].mxu0
    %v469 = vpop.f32.mrb[0].mxu0
    %470 = vdwg.mxu0
    %471 = vst.msk [vmem:[#allocation2] sm:$0xff] %vm42, %v466
    %v472 = vpack.c.bf16 %v125, %v125
    %v473 = vpack.c.bf16 %v262, %v261
    %v474 = vpack.c.bf16 %v354, %v353
    %v476 = vsel %vm42, %v472, 0
    %v479 = vsel %vm42, %v473, 0
    %481 = vmatprep.subr.bf16.mxu0 0
    %482 = vmatpush1.bf16.xpose.msra.mxu0 %v479
    %483 = vmatprep.subr.bf16.mxu0 0
    %484 = vmatpush1.bf16.xpose.msra.mxu0 0
    %485 = vmatprep.subr.bf16.mxu0 0
    %486 = vmatpush1.bf16.xpose.msra.mxu0 0
    %487 = vmatprep.subr.bf16.mxu0 0
    %488 = vmatpush1.bf16.xpose.msra.mxu0 0
    %489 = vmatprep.subr.bf16.mxu0 0
    %490 = vmatpush1.bf16.xpose.msra.mxu0 0
    %491 = vmatprep.subr.bf16.mxu0 0
    %492 = vmatpush1.bf16.xpose.msra.mxu0 0
    %493 = vmatprep.subr.bf16.mxu0 0
    %494 = vmatpush1.bf16.xpose.msra.mxu0 0
    %495 = vmatprep.subr.bf16.mxu0 0
    %496 = vmatpush1.bf16.xpose.msra.mxu0 0
    %497 = vmatprep.subr.bf16.mxu0 0
    %498 = vmatpush1.bf16.xpose.msra.mxu0 0
    %499 = vmatprep.subr.bf16.mxu0 0
    %500 = vmatpush1.bf16.xpose.msra.mxu0 0
    %501 = vmatprep.subr.bf16.mxu0 0
    %502 = vmatpush1.bf16.xpose.msra.mxu0 0
    %503 = vmatprep.subr.bf16.mxu0 0
    %504 = vmatpush1.bf16.xpose.msra.mxu0 0
    %505 = vmatprep.subr.bf16.mxu0 0
    %506 = vmatpush1.bf16.xpose.msra.mxu0 0
    %507 = vmatprep.subr.bf16.mxu0 0
    %508 = vmatpush1.bf16.xpose.msra.mxu0 0
    %509 = vmatprep.subr.bf16.mxu0 0
    %510 = vmatpush1.bf16.xpose.msra.mxu0 0
    %511 = vmatprep.subr.bf16.mxu0 0
    %512 = vmatpush1.bf16.xpose.msra.mxu0 0
    %513 = vmatprep.mubr.bf16.mxu0 0
    %514 = vmatmul.mubr.bf16.gmra.mrb[0].mxu0 %v476
    %v515 = vpop.f32.mrb[0].mxu0
    %v516 = vadd.f32 0.0, %v515
    %v517 = vpop.f32.mrb[0].mxu0
    %v518 = vpop.f32.mrb[0].mxu0
    %v519 = vpop.f32.mrb[0].mxu0
    %520 = vdwg.mxu0
    %v521 = vsel %vm42, %v516, -inf
    %v522 = vrot.slane %v521, 4
    %v523 = vmax.f32 %v521, %v522
    %v524 = vrot.slane %v523, 2
    %v525 = vmax.f32 %v523, %v524
    %v526 = vrot.slane %v525, 1
    %v527 = vmax.f32 %v525, %v526
    %v528 = vsub.f32 %v516, %v527
    %v529 = vmul.f32 %v528, 1.442695
    %v530 = vpow.pop %v529
    %v531 = vsel %vm42, %v530, 0.0
    %v532 = vrot.slane %v531, 4
    %v533 = vadd.f32 %v531, %v532
    %v534 = vrot.slane %v533, 2
    %v535 = vadd.f32 %v533, %v534
    %v536 = vrot.slane %v535, 1
    %v537 = vadd.f32 %v535, %v536
    %v538 = vrcp.pop %v537
    %v539 = vmul.f32 %v530, %v538
    %v540 = vpack.c.bf16 %v539, %v539
    %542 = vrot.lane.b32.xlu0 %v474, 112
    %v543 = vpop.permute.xlu0 %542
    %v546 = vsel %vm42, %v540, 0
    %548 = vmatprep.subr.bf16.mxu0 0
    %549 = vmatpush1.bf16.msra.mxu0 %v543
    %550 = vmatprep.subr.bf16.mxu0 0
    %551 = vmatpush1.bf16.msra.mxu0 0
    %552 = vmatprep.subr.bf16.mxu0 0
    %553 = vmatpush1.bf16.msra.mxu0 0
    %554 = vmatprep.subr.bf16.mxu0 0
    %555 = vmatpush1.bf16.msra.mxu0 0
    %556 = vmatprep.subr.bf16.mxu0 0
    %557 = vmatpush1.bf16.msra.mxu0 0
    %558 = vmatprep.subr.bf16.mxu0 0
    %559 = vmatpush1.bf16.msra.mxu0 0
    %560 = vmatprep.subr.bf16.mxu0 0
    %561 = vmatpush1.bf16.msra.mxu0 0
    %562 = vmatprep.subr.bf16.mxu0 0
    %563 = vmatpush1.bf16.msra.mxu0 0
    %564 = vmatprep.subr.bf16.mxu0 0
    %565 = vmatpush1.bf16.msra.mxu0 0
    %566 = vmatprep.subr.bf16.mxu0 0
    %567 = vmatpush1.bf16.msra.mxu0 0
    %568 = vmatprep.subr.bf16.mxu0 0
    %569 = vmatpush1.bf16.msra.mxu0 0
    %570 = vmatprep.subr.bf16.mxu0 0
    %571 = vmatpush1.bf16.msra.mxu0 0
    %572 = vmatprep.subr.bf16.mxu0 0
    %573 = vmatpush1.bf16.msra.mxu0 0
    %574 = vmatprep.subr.bf16.mxu0 0
    %575 = vmatpush1.bf16.msra.mxu0 0
    %576 = vmatprep.subr.bf16.mxu0 0
    %577 = vmatpush1.bf16.msra.mxu0 0
    %578 = vmatprep.subr.bf16.mxu0 0
    %579 = vmatpush1.bf16.msra.mxu0 0
    %580 = vmatprep.mubr.bf16.mxu0 0
    %581 = vmatmul.mubr.bf16.gmra.mrb[0].mxu0 %v546
    %v582 = vpop.f32.mrb[0].mxu0
    %v583 = vadd.f32 %v23, %v582
    %v584 = vpop.f32.mrb[0].mxu0
    %v585 = vpop.f32.mrb[0].mxu0
    %v586 = vpop.f32.mrb[0].mxu0
    %587 = vdwg.mxu0
    %588 = vst.msk [vmem:[#allocation2 + $0x8] sm:$0xff] %vm42, %v583
    // Predicated region
    $region22: #{tpu_custom_call.1} parent=1 // pred_check
      _
    $region23: #{tpu_custom_call.1} parent=1 // pred_check_branch
      %590 = sbr.rel (0) target = $region25
    $region24: #{tpu_custom_call.1} parent=1 // pred_region
      %s592 = ssub.s32 256, 256
      %593 = vsyncadd [#allocation3], %s592
      %s594 = sshll.u32 [#allocation2], 4
      %s595 = int_to_ptr.vmem [resolvable:$true] %s594
      %600 = dma.vmem_to_hbm [thread:$0]  %s595, 256, %s5, [#allocation3], 128, 128, 8
    $region25: #{tpu_custom_call.1} parent=1 // pred_fallthru
      _
    // Predicated region
    $region26: #{tpu_custom_call.1} parent=1 // pred_check
      _
    $region27: #{tpu_custom_call.1} parent=1 // pred_check_branch
      %602 = sbr.rel (0) target = $region29
    $region28: #{tpu_custom_call.1} parent=1 // pred_region
      %603 = dma.done [#allocation3], 256
    $region29: #{tpu_custom_call.1} parent=1 // pred_fallthru
      _
    %604 = vsyncpa [#allocation3], 1

</llo_original>
